<compile_context>
chip_gen: v7x
topology: tpu7x:2x2x1
jax: 0.10.0
libtpu: 0.0.40
codegen_flags: <defaults>
</compile_context>

<pallas_src>
import math
from functools import partial

import jax
import jax.numpy as jnp
from jax.experimental import pallas as pl
from jax.experimental.pallas import tpu as pltpu


def _round_up(x, m):
    return ((x + m - 1) // m) * m


def _linear_tanh_kernel(x_ref, w_ref, b_ref, o_ref, *, compute_dtype):
    # x_ref : [tm, K]   input-row tile (native dtype; cast here, not in wrapper)
    # w_ref : [tn, K]   weight rows in nn.Linear [out, in] layout (no transpose copy)
    # b_ref : [1, tn]   bias slice
    # o_ref : [tm, tn]  output tile
    x = x_ref[...].astype(compute_dtype)
    w = w_ref[...].astype(compute_dtype)
    # Contract the K (last) dims of both operands: y = x @ W^T on the MXU.
    y = jax.lax.dot_general(
        x, w,
        dimension_numbers=(((1,), (1,)), ((), ())),
        preferred_element_type=jnp.float32,
    )
    y = y + b_ref[...].astype(jnp.float32)
    o_ref[...] = jnp.tanh(y).astype(o_ref.dtype)


def linear_tanh(x, weight, bias, *, block_m=512, block_n=512, use_bf16=True):
    """Fused y = tanh(x @ W^T + b).

    x      : [M, K]   (K = in_features)
    weight : [N, K]   (PyTorch nn.Linear layout, NOT transposed)
    bias   : [N]
    returns: [M, N] in x.dtype
    """
    M, K = x.shape
    N, Kw = weight.shape
    assert Kw == K and bias.shape == (N,)
    out_dtype = x.dtype
    compute_dtype = jnp.bfloat16 if use_bf16 else x.dtype

    # Row tiling: keep the whole (small) pooler batch resident in one tile
    # whenever it fits; otherwise use a sublane-aligned row block.
    if M <= block_m:
        tm, M_pad = M, M
    else:
        tm = block_m                      # multiple of 8/16 sublanes
        M_pad = _round_up(M, tm)

    # Output-column tiling: fewest tiles <= block_n, each a 128 multiple
    # (2 tiles for BERT's N=768/1024 -> one per TensorCore on v7x).
    if N <= block_n:
        tn, N_pad = N, N
    else:
        n_tiles = -(-N // block_n)
        tn = _round_up(-(-N // n_tiles), 128)
        N_pad = n_tiles * tn

    grid = (M_pad // tm, N_pad // tn)

    # Pad only when the tile grid actually requires it.  Zero padding keeps the
    # sliced result exact: padded weight rows contribute 0 to the dot, padded
    # bias columns give tanh(0)=0 and are sliced away, padded x rows are sliced.
    x_in = x if M_pad == M else jnp.pad(x, ((0, M_pad - M), (0, 0)))
    w_in = weight if N_pad == N else jnp.pad(weight, ((0, N_pad - N), (0, 0)))
    b_in = bias.reshape(1, N)
    if N_pad != N:
        b_in = jnp.pad(b_in, ((0, 0), (0, N_pad - N)))

    # VMEM budget: actual tile footprint with buffering headroom, capped well
    # under v7x's 64 MiB physical VMEM per TC.
    itm = lambda a: jnp.dtype(a.dtype).itemsize
    tile_bytes = (tm * K * itm(x) + tn * K * itm(weight)
                  + tn * itm(bias) + tm * tn * jnp.dtype(out_dtype).itemsize)
    vmem_limit = int(min(48 * 2**20, max(16 * 2**20, 6 * tile_bytes)))

    cost = pl.CostEstimate(
        flops=2 * M_pad * K * N_pad,
        transcendentals=M_pad * N_pad,
        bytes_accessed=(M_pad * K * itm(x) + N_pad * K * itm(weight)
                        + N_pad * itm(bias)
                        + M_pad * N_pad * jnp.dtype(out_dtype).itemsize),
    )

    # Triple-buffer the streamed weight tiles only when the j loop is long
    # enough for the extra buffer to hide exposed DMA.
    w_spec_kwargs = {"pipeline_mode": pl.Buffered(3)} if grid[1] >= 3 else {}

    out = pl.pallas_call(
        partial(_linear_tanh_kernel, compute_dtype=compute_dtype),
        out_shape=jax.ShapeDtypeStruct((M_pad, N_pad), out_dtype),
        grid_spec=pltpu.PrefetchScalarGridSpec(
            num_scalar_prefetch=0,
            grid=grid,
            in_specs=[
                pl.BlockSpec((tm, K), lambda i, j: (i, 0)),   # x rows, resident over j
                pl.BlockSpec((tn, K), lambda i, j: (j, 0),    # native [N,K] weight stream
                             **w_spec_kwargs),
                pl.BlockSpec((1, tn), lambda i, j: (0, j)),   # bias slice
            ],
            out_specs=pl.BlockSpec((tm, tn), lambda i, j: (i, j)),
        ),
        compiler_params=pltpu.CompilerParams(
            dimension_semantics=("parallel", "parallel"),
            vmem_limit_bytes=vmem_limit,
        ),
        cost_estimate=cost,
    )(x_in, w_in, b_in)

    if (M_pad, N_pad) != (M, N):
        out = out[:M, :N]
    return out


def bert_pooler(hidden_states, weight, bias, **kwargs):
    """BertPooler forward: pooled = tanh(hidden_states[:, 0] @ W^T + b)."""
    # [CLS] select stays a tiny wrapper slice so the kernel never touches the
    # other seq positions; everything else goes straight into pallas_call.
    first_token = hidden_states[:, 0, :]   # [B, K]
    return linear_tanh(first_token, weight, bias, **kwargs)


def _reference(hidden_states, weight, bias):
    x = hidden_states[:, 0, :]
    return jnp.tanh(jnp.einsum("bk,nk->bn", x, weight) + bias)


if __name__ == "__main__":
    def make_inputs(key, batch, seq, hidden):
        kx, kw, kb = jax.random.split(key, 3)
        # nn.Linear-style init: U(-1/sqrt(in), 1/sqrt(in))
        bound = 1.0 / math.sqrt(hidden)
        weight = jax.random.uniform(kw, (hidden, hidden), jnp.float32, -bound, bound)
        bias = jax.random.uniform(kb, (hidden,), jnp.float32, -bound, bound)
        hidden_states = jax.random.normal(kx, (batch, seq, hidden), jnp.float32)
        return hidden_states, weight, bias

    # Primary (module-sized) config: batch=2, seq=8, hidden=32.
    hs, w, b = make_inputs(jax.random.PRNGKey(0), 2, 8, 32)
    out = jax.block_until_ready(bert_pooler(hs, w, b))
    ref = _reference(hs, w, b)
    assert out.shape == (2, 32), out.shape
    assert jnp.allclose(out, ref, atol=3e-2), float(jnp.max(jnp.abs(out - ref)))

    # Lane-aligned fast path (no padding), full-precision escape hatch.
    hs, w, b = make_inputs(jax.random.PRNGKey(1), 4, 8, 128)
    out = jax.block_until_ready(bert_pooler(hs, w, b, use_bf16=False))
    ref = _reference(hs, w, b)
    assert jnp.allclose(out, ref, atol=1e-5), float(jnp.max(jnp.abs(out - ref)))

    # Tiled path (row tiles + 2 column tiles, 2x2 grid) at small sizes.
    hs, w, b = make_inputs(jax.random.PRNGKey(2), 16, 8, 256)
    out = jax.block_until_ready(bert_pooler(hs, w, b, block_m=8, block_n=128))
    ref = _reference(hs, w, b)
    assert jnp.allclose(out, ref, atol=3e-2), float(jnp.max(jnp.abs(out - ref)))

    print("KERNEL_OK")
</pallas_src>

<mosaic_0001>
module attributes {stable_mosaic.version = 11 : i64} {
  func.func @_linear_tanh_kernel(%arg0: i32, %arg1: i32, %arg2: memref<2x32xf32, #tpu.memory_space<vmem>>, %arg3: memref<32x32xf32, #tpu.memory_space<vmem>>, %arg4: memref<1x32xf32, #tpu.memory_space<vmem>>, %arg5: memref<2x32xf32, #tpu.memory_space<vmem>>) attributes {dimension_semantics = [#tpu.dimension_semantics<parallel>, #tpu.dimension_semantics<parallel>], iteration_bounds = array<i64: 1, 1>, scalar_prefetch = 0 : i64, scratch_operands = 0 : i64, tpu.core_type = #tpu.core_type<tc>, window_params = [{transform_indices = @transform_0, window_bounds = array<i64: 2, 32>}, {transform_indices = @transform_1, window_bounds = array<i64: 32, 32>}, {transform_indices = @transform_2, window_bounds = array<i64: 1, 32>}, {transform_indices = @transform_3, window_bounds = array<i64: 2, 32>}]} {
    %c0 = arith.constant 0 : index
    %c0_0 = arith.constant 0 : index
    %0 = vector.load %arg2[%c0, %c0_0] : memref<2x32xf32, #tpu.memory_space<vmem>>, vector<2x32xf32>
    %1 = arith.truncf %0 : vector<2x32xf32> to vector<2x32xbf16>
    %c0_1 = arith.constant 0 : index
    %c0_2 = arith.constant 0 : index
    %2 = vector.load %arg3[%c0_1, %c0_2] : memref<32x32xf32, #tpu.memory_space<vmem>>, vector<32x32xf32>
    %3 = arith.truncf %2 : vector<32x32xf32> to vector<32x32xbf16>
    %cst = arith.constant dense<0.000000e+00> : vector<2x32xf32>
    %4 = tpu.matmul %1, %3, %cst {dimension_numbers = #tpu.dot_dimension_numbers<[1], [1], [0], [0], [0, 0, 1, 0], [], []>} : vector<2x32xbf16>, vector<32x32xbf16>, vector<2x32xf32> -> vector<2x32xf32>
    %c0_3 = arith.constant 0 : index
    %c0_4 = arith.constant 0 : index
    %5 = vector.load %arg4[%c0_3, %c0_4] : memref<1x32xf32, #tpu.memory_space<vmem>>, vector<1x32xf32>
    %6 = vector.broadcast %5 : vector<1x32xf32> to vector<2x32xf32>
    %7 = arith.addf %4, %6 : vector<2x32xf32>
    %8 = math.tanh %7 : vector<2x32xf32>
    %c0_5 = arith.constant 0 : index
    %c0_6 = arith.constant 0 : index
    %9 = vector.load %arg5[%c0_5, %c0_6] : memref<2x32xf32, #tpu.memory_space<vmem>>, vector<2x32xf32>
    tpu.vector_store %arg5[%c0_5, %c0_6], %8 {strides = array<i32>} : memref<2x32xf32, #tpu.memory_space<vmem>>, vector<2x32xf32>,
    return
  }
  func.func @transform_0(%arg0: i32, %arg1: i32) -> (i32, i32) {
    %c0_i32 = arith.constant 0 : i32
    %c0_i32_0 = arith.constant 0 : i32
    return %arg0, %c0_i32 : i32, i32
  }
  func.func @transform_1(%arg0: i32, %arg1: i32) -> (i32, i32) {
    %c0_i32 = arith.constant 0 : i32
    %c0_i32_0 = arith.constant 0 : i32
    return %arg1, %c0_i32 : i32, i32
  }
  func.func @transform_2(%arg0: i32, %arg1: i32) -> (i32, i32) {
    %c0_i32 = arith.constant 0 : i32
    %c0_i32_0 = arith.constant 0 : i32
    return %c0_i32, %arg1 : i32, i32
  }
  func.func @transform_3(%arg0: i32, %arg1: i32) -> (i32, i32) {
    %c0_i32 = arith.constant 0 : i32
    return %arg0, %arg1 : i32, i32
  }
}

</mosaic_0001>

<llo_original>
// kernel: tpu_custom_call.1
$region0: #{tpu_custom_call.1}
  #allocation0 [shape = 'u32[]', space=smem, size = 0x4, offset = 0x4, fixed_abs, tag = 'smem constant byte address 0x4 - core index']
  #allocation1 [shape = 'u32[144,128]{1,0:T(1,128)}', space=vmem, size = 0x12000, scoped, tag = 'internal scratch']
  %s0 = inlined_call_operand.hbm [shape: f32[2,32], index: 0, kind: input, shape index: {}]
  %s1 = inlined_call_operand.hbm [shape: f32[32,32], index: 1, kind: input, shape index: {}]
  %s2 = inlined_call_operand.vmem [shape: f32[1,32], index: 2, kind: input, shape index: {}]
  %s3 = inlined_call_operand.hbm [shape: f32[2,32], index: 3, kind: output, shape index: {}]
  %s4 = sld [smem:[#allocation0]]
  $region30: #{tpu_custom_call.1} parent=0
    _
  %s6 = ssub.s32 1, %s4
  %s7 = scalar_select 0, %s6, %s4
  $region1: #{tpu_custom_call.1} parent=0
    #allocation2 [shape = 'u8[1024]{0}', space=vmem, size = 0x400, scoped, tag = 'input window, operand 0, single buffered']
    #allocation3 [shape = 's32[1]{0}', space=sflag, size = 0x4, scoped, tag = 'scoped memory for tpu_custom_call.1']
    #allocation4 [shape = 's32[1]{0}', space=sflag, size = 0x4, scoped, tag = 'scoped memory for tpu_custom_call.1']
    #allocation5 [shape = 'u8[16384]{0}', space=vmem, size = 0x4000, scoped, tag = 'input window, operand 1, single buffered']
    #allocation6 [shape = 's32[1]{0}', space=sflag, size = 0x4, scoped, tag = 'scoped memory for tpu_custom_call.1']
    #allocation7 [shape = 'u8[1024]{0}', space=vmem, size = 0x400, scoped, tag = 'output window, operand 0, single buffered']
    %8 = vsyncpa [#allocation3], 0
    %9 = vsyncpa [#allocation6], 0
    %10 = vsyncpa [#allocation4], 0
    // Predicated region
    $region2: #{tpu_custom_call.1} parent=1 // pred_check
      _
    $region3: #{tpu_custom_call.1} parent=1 // pred_check_branch
      %12 = sbr.rel (0) target = $region5
    $region4: #{tpu_custom_call.1} parent=1 // pred_region
      %s14 = ssub.s32 32, 32
      %15 = vsyncadd [#allocation3], %s14
      %s17 = sshll.u32 [#allocation2], 4
      %s18 = int_to_ptr.vmem [resolvable:$true] %s17
      %20 = dma.hbm_to_vmem [thread:$0]  %s0, 32, %s18, [#allocation3]
    $region5: #{tpu_custom_call.1} parent=1 // pred_fallthru
      _
    // Predicated region
    $region6: #{tpu_custom_call.1} parent=1 // pred_check
      _
    $region7: #{tpu_custom_call.1} parent=1 // pred_check_branch
      %22 = sbr.rel (0) target = $region9
    $region8: #{tpu_custom_call.1} parent=1 // pred_region
      %s24 = ssub.s32 512, 512
      %25 = vsyncadd [#allocation6], %s24
      %s26 = sshll.u32 [#allocation5], 4
      %s27 = int_to_ptr.vmem [resolvable:$true] %s26
      %32 = dma.hbm_to_vmem [thread:$0]  %s1, 512, %s27, [#allocation6], 128, 128, 8
    $region9: #{tpu_custom_call.1} parent=1 // pred_fallthru
      _
    // Predicated region
    $region10: #{tpu_custom_call.1} parent=1 // pred_check
      _
    $region11: #{tpu_custom_call.1} parent=1 // pred_check_branch
      %34 = sbr.rel (0) target = $region13
    $region12: #{tpu_custom_call.1} parent=1 // pred_region
      _
    $region13: #{tpu_custom_call.1} parent=1 // pred_fallthru
      _
    // Predicated region
    $region14: #{tpu_custom_call.1} parent=1 // pred_check
      _
    $region15: #{tpu_custom_call.1} parent=1 // pred_check_branch
      %36 = sbr.rel (0) target = $region17
    $region16: #{tpu_custom_call.1} parent=1 // pred_region
      %37 = dma.done [#allocation3], 32
    $region17: #{tpu_custom_call.1} parent=1 // pred_fallthru
      _
    // Predicated region
    $region18: #{tpu_custom_call.1} parent=1 // pred_check
      _
    $region19: #{tpu_custom_call.1} parent=1 // pred_check_branch
      %39 = sbr.rel (0) target = $region21
    $region20: #{tpu_custom_call.1} parent=1 // pred_region
      %40 = dma.done [#allocation6], 512
    $region21: #{tpu_custom_call.1} parent=1 // pred_fallthru
      _
    %v42 = vld [vmem:[#allocation2] sm:$0x3]
    %v43 = vpack.c.bf16 %v42, %v42
    %v44 = vld [vmem:[#allocation5] sm:$0xff]
    %v45 = vld [vmem:[#allocation5 + $0x8] sm:$0xff]
    %v46 = vld [vmem:[#allocation5 + $0x10] sm:$0xff]
    %v47 = vld [vmem:[#allocation5 + $0x18] sm:$0xff]
    %v48 = vpack.c.bf16 %v45, %v44
    %v49 = vpack.c.bf16 %v47, %v46
    %v50 = vld [vmem:[%s2] sm:$0x1]
    %v52 = vlaneseq
    %v53 = vshrl.u32 %v52, 7
    %v54 = vsub.s32 0, %v53
    %v55 = vrot.slane %v50, %v54
    %vm57 = vcmask 261120
    %v59 = vsel %vm57, %v43, 0
    %v62 = vsel %vm57, %v48, 0
    %v65 = vsel %vm57, %v49, 0
    %67 = vmatprep.subr.bf16.mxu0 0
    %68 = vmatpush1.bf16.xpose.msra.mxu0 %v62
    %69 = vmatprep.subr.bf16.mxu0 0
    %70 = vmatpush1.bf16.xpose.msra.mxu0 %v65
    %71 = vmatprep.subr.bf16.mxu0 0
    %72 = vmatpush1.bf16.xpose.msra.mxu0 0
    %73 = vmatprep.subr.bf16.mxu0 0
    %74 = vmatpush1.bf16.xpose.msra.mxu0 0
    %75 = vmatprep.subr.bf16.mxu0 0
    %76 = vmatpush1.bf16.xpose.msra.mxu0 0
    %77 = vmatprep.subr.bf16.mxu0 0
    %78 = vmatpush1.bf16.xpose.msra.mxu0 0
    %79 = vmatprep.subr.bf16.mxu0 0
    %80 = vmatpush1.bf16.xpose.msra.mxu0 0
    %81 = vmatprep.subr.bf16.mxu0 0
    %82 = vmatpush1.bf16.xpose.msra.mxu0 0
    %83 = vmatprep.subr.bf16.mxu0 0
    %84 = vmatpush1.bf16.xpose.msra.mxu0 0
    %85 = vmatprep.subr.bf16.mxu0 0
    %86 = vmatpush1.bf16.xpose.msra.mxu0 0
    %87 = vmatprep.subr.bf16.mxu0 0
    %88 = vmatpush1.bf16.xpose.msra.mxu0 0
    %89 = vmatprep.subr.bf16.mxu0 0
    %90 = vmatpush1.bf16.xpose.msra.mxu0 0
    %91 = vmatprep.subr.bf16.mxu0 0
    %92 = vmatpush1.bf16.xpose.msra.mxu0 0
    %93 = vmatprep.subr.bf16.mxu0 0
    %94 = vmatpush1.bf16.xpose.msra.mxu0 0
    %95 = vmatprep.subr.bf16.mxu0 0
    %96 = vmatpush1.bf16.xpose.msra.mxu0 0
    %97 = vmatprep.subr.bf16.mxu0 0
    %98 = vmatpush1.bf16.xpose.msra.mxu0 0
    %99 = vmatprep.mubr.bf16.mxu0 0
    %100 = vmatmul.mubr.bf16.gmra.mrb[0].mxu0 %v59
    %v101 = vpop.f32.mrb[0].mxu0
    %v102 = vadd.f32 %v55, %v101
    %v103 = vpop.f32.mrb[0].mxu0
    %v104 = vpop.f32.mrb[0].mxu0
    %v105 = vpop.f32.mrb[0].mxu0
    %106 = vdwg.mxu0
    %v107 = vtanh.pop %v102
    %vm108 = vcmask 254976
    %109 = vst.msk [vmem:[#allocation7] sm:$0x3] %vm108, %v107
    // Predicated region
    $region22: #{tpu_custom_call.1} parent=1 // pred_check
      _
    $region23: #{tpu_custom_call.1} parent=1 // pred_check_branch
      %111 = sbr.rel (0) target = $region25
    $region24: #{tpu_custom_call.1} parent=1 // pred_region
      %s113 = ssub.s32 32, 32
      %114 = vsyncadd [#allocation4], %s113
      %s116 = sshll.u32 [#allocation7], 4
      %s117 = int_to_ptr.vmem [resolvable:$true] %s116
      %119 = dma.vmem_to_hbm [thread:$0]  %s117, 32, %s3, [#allocation4]
    $region25: #{tpu_custom_call.1} parent=1 // pred_fallthru
      _
    // Predicated region
    $region26: #{tpu_custom_call.1} parent=1 // pred_check
      _
    $region27: #{tpu_custom_call.1} parent=1 // pred_check_branch
      %121 = sbr.rel (0) target = $region29
    $region28: #{tpu_custom_call.1} parent=1 // pred_region
      %122 = dma.done [#allocation4], 32
    $region29: #{tpu_custom_call.1} parent=1 // pred_fallthru
      _
    %123 = vsyncpa [#allocation3], 1
    %124 = vsyncpa [#allocation6], 1
    %125 = vsyncpa [#allocation4], 1

</llo_original>
